<compile_context>
chip_gen: v5e
topology: v5e:2x2
jax: 0.10.0
libtpu: 0.0.40
codegen_flags: <defaults>
</compile_context>

<pallas_src>
import jax
import jax.numpy as jnp
from jax.experimental import pallas as pl
from jax.experimental.pallas import tpu as pltpu

IN_DIM = 6
HIDDEN = 50
OUT_DIM = 2

IN_PAD = 8        # pad 6  -> 8   (f32 sublane multiple)
HID_PAD = 56      # pad 50 -> 56  (f32 sublane multiple)
OUT_PAD = 8       # pad 2  -> 8   (f32 sublane multiple)


def _round_up(n, m):
    return ((n + m - 1) // m) * m


def _mlp_kernel(xT_ref, w1t_ref, b1_ref, w2t_ref, b2_ref, w3t_ref, b3_ref, o_ref):
    xT = xT_ref[...]                                               # (IN_PAD, bt)

    # fc1 + sigmoid   (padded K-columns of w1t are zero -> padding inert)
    h1 = jnp.dot(w1t_ref[...], xT, preferred_element_type=jnp.float32)
    h1 = jax.nn.sigmoid(h1 + b1_ref[...])                          # (HID_PAD, bt)

    # fc2 + sigmoid
    h2 = jnp.dot(w2t_ref[...], h1, preferred_element_type=jnp.float32)
    h2 = jax.nn.sigmoid(h2 + b2_ref[...])                          # (HID_PAD, bt)

    # fc3
    logits = jnp.dot(w3t_ref[...], h2, preferred_element_type=jnp.float32)
    logits = logits + b3_ref[...]                                  # (OUT_PAD, bt)

    # Explicit 2-class log_softmax over the (sublane) class axis:
    # pure VPU/EUP element-wise math, no axis reductions over padded lanes.
    l0 = logits[0:1, :]
    l1 = logits[1:2, :]
    m = jnp.maximum(l0, l1)
    lse = m + jnp.log(jnp.exp(l0 - m) + jnp.exp(l1 - m))           # (1, bt)

    # Full lane-dense (OUT_PAD, bt) store; rows 2..7 are padding, sliced off
    # outside the kernel.
    o_ref[...] = logits - lse


def net_forward(x, packed, *, batch_tile=512):
    """x: (B, IN_DIM) float32.  packed: dict of padded/transposed params."""
    B = x.shape[0]
    bt = min(batch_tile, _round_up(max(B, 1), 128))   # batch tile (lane axis)
    Bp = _round_up(B, bt)

    # Feature-major, padded input: (IN_PAD, Bp), batch on lanes.
    xT = jnp.zeros((IN_PAD, Bp), jnp.float32).at[:IN_DIM, :B].set(x.T)

    w1t, b1 = packed["w1t"], packed["b1"]
    w2t, b2 = packed["w2t"], packed["b2"]
    w3t, b3 = packed["w3t"], packed["b3"]

    # Weights/biases: full-extent blocks with a constant index_map so they are
    # DMA'd once and stay VMEM-resident across the batch grid.
    def const_spec(a):
        return pl.BlockSpec(a.shape, lambda i: (0, 0))

    grid = (Bp // bt,)

    flops = 2 * Bp * (IN_PAD * HID_PAD + HID_PAD * HID_PAD + HID_PAD * OUT_PAD)
    transcendentals = Bp * (2 * HID_PAD + 3)
    weight_bytes = 4 * (HID_PAD * IN_PAD + HID_PAD + HID_PAD * HID_PAD + HID_PAD
                        + OUT_PAD * HID_PAD + OUT_PAD)
    bytes_accessed = 4 * Bp * (IN_PAD + OUT_PAD) + weight_bytes

    out_padded = pl.pallas_call(
        _mlp_kernel,
        out_shape=jax.ShapeDtypeStruct((OUT_PAD, Bp), jnp.float32),
        grid=grid,
        in_specs=[
            pl.BlockSpec((IN_PAD, bt), lambda i: (0, i)),   # streamed x tile
            const_spec(w1t), const_spec(b1),
            const_spec(w2t), const_spec(b2),
            const_spec(w3t), const_spec(b3),
        ],
        out_specs=pl.BlockSpec((OUT_PAD, bt), lambda i: (0, i)),
        compiler_params=pltpu.CompilerParams(
            dimension_semantics=("parallel",)),
        cost_estimate=pl.CostEstimate(
            flops=flops,
            transcendentals=transcendentals,
            bytes_accessed=bytes_accessed),
    )(xT, w1t, b1, w2t, b2, w3t, b3)

    # Drop class/batch padding, return PyTorch-shaped (B, OUT_DIM).
    return out_padded[:OUT_DIM, :B].T


def init_params(key):
    """nn.Linear-style init in PyTorch layout: W (out, in), b (out,)."""
    ks = jax.random.split(key, 6)

    def linear(kw, kb, fan_in, fan_out):
        bound = 1.0 / jnp.sqrt(jnp.float32(fan_in))
        w = jax.random.uniform(kw, (fan_out, fan_in), jnp.float32, -bound, bound)
        b = jax.random.uniform(kb, (fan_out,), jnp.float32, -bound, bound)
        return w, b

    w1, b1 = linear(ks[0], ks[1], IN_DIM, HIDDEN)
    w2, b2 = linear(ks[2], ks[3], HIDDEN, HIDDEN)
    w3, b3 = linear(ks[4], ks[5], HIDDEN, OUT_DIM)
    return {"w1": w1, "b1": b1, "w2": w2, "b2": b2, "w3": w3, "b3": b3}


def pack_params(p):
    """Zero-pad PyTorch-layout params to tile-aligned, kernel-ready shapes."""
    def pad2(a, rows, cols):
        out = jnp.zeros((rows, cols), jnp.float32)
        return out.at[:a.shape[0], :a.shape[1]].set(a)

    return {
        "w1t": pad2(p["w1"], HID_PAD, IN_PAD),          # (56, 8)  = W1 (out,in)
        "b1":  pad2(p["b1"][:, None], HID_PAD, 1),      # (56, 1)
        "w2t": pad2(p["w2"], HID_PAD, HID_PAD),         # (56, 56)
        "b2":  pad2(p["b2"][:, None], HID_PAD, 1),      # (56, 1)
        "w3t": pad2(p["w3"], OUT_PAD, HID_PAD),         # (8, 56)
        "b3":  pad2(p["b3"][:, None], OUT_PAD, 1),      # (8, 1)
    }


def reference_forward(x, p):
    """Pure-JAX reference matching the PyTorch module exactly."""
    h1 = jax.nn.sigmoid(x @ p["w1"].T + p["b1"])
    h2 = jax.nn.sigmoid(h1 @ p["w2"].T + p["b2"])
    logits = h2 @ p["w3"].T + p["b3"]
    return jax.nn.log_softmax(logits, axis=-1)


if __name__ == "__main__":
    key = jax.random.PRNGKey(0)
    k_x, k_p = jax.random.split(key)

    B = 8
    x = jax.random.normal(k_x, (B, IN_DIM), dtype=jnp.float32)
    params = init_params(k_p)
    packed = pack_params(params)

    out = net_forward(x, packed)
    out = jax.block_until_ready(out)

    # sanity checks
    assert out.shape == (B, OUT_DIM)
    assert bool(jnp.all(jnp.isfinite(out)))
    row_sums = jnp.exp(out).sum(axis=-1)
    assert bool(jnp.allclose(row_sums, 1.0, atol=1e-5))

    ref = reference_forward(x, params)
    assert bool(jnp.allclose(out, ref, atol=1e-4, rtol=1e-4))

    print("KERNEL_OK")
</pallas_src>

<mosaic_0001>
module attributes {stable_mosaic.version = 11 : i64} {
  func.func @_mlp_kernel(%arg0: i32, %arg1: memref<8x128xf32, #tpu.memory_space<vmem>>, %arg2: memref<56x8xf32, #tpu.memory_space<vmem>>, %arg3: memref<56x1xf32, #tpu.memory_space<vmem>>, %arg4: memref<56x56xf32, #tpu.memory_space<vmem>>, %arg5: memref<56x1xf32, #tpu.memory_space<vmem>>, %arg6: memref<8x56xf32, #tpu.memory_space<vmem>>, %arg7: memref<8x1xf32, #tpu.memory_space<vmem>>, %arg8: memref<8x128xf32, #tpu.memory_space<vmem>>) attributes {dimension_semantics = [#tpu.dimension_semantics<parallel>], iteration_bounds = array<i64: 1>, scalar_prefetch = 0 : i64, scratch_operands = 0 : i64, tpu.core_type = #tpu.core_type<tc>, window_params = [{transform_indices = @transform_0, window_bounds = array<i64: 8, 128>}, {pipeline_mode = #tpu.pipeline_mode<synchronous>, transform_indices = @transform_1, window_bounds = array<i64: 56, 8>}, {pipeline_mode = #tpu.pipeline_mode<synchronous>, transform_indices = @transform_2, window_bounds = array<i64: 56, 1>}, {pipeline_mode = #tpu.pipeline_mode<synchronous>, transform_indices = @transform_3, window_bounds = array<i64: 56, 56>}, {pipeline_mode = #tpu.pipeline_mode<synchronous>, transform_indices = @transform_4, window_bounds = array<i64: 56, 1>}, {pipeline_mode = #tpu.pipeline_mode<synchronous>, transform_indices = @transform_5, window_bounds = array<i64: 8, 56>}, {pipeline_mode = #tpu.pipeline_mode<synchronous>, transform_indices = @transform_6, window_bounds = array<i64: 8, 1>}, {transform_indices = @transform_7, window_bounds = array<i64: 8, 128>}]} {
    %c0 = arith.constant 0 : index
    %c0_0 = arith.constant 0 : index
    %0 = vector.load %arg1[%c0, %c0_0] : memref<8x128xf32, #tpu.memory_space<vmem>>, vector<8x128xf32>
    %c0_1 = arith.constant 0 : index
    %c0_2 = arith.constant 0 : index
    %1 = vector.load %arg2[%c0_1, %c0_2] : memref<56x8xf32, #tpu.memory_space<vmem>>, vector<56x8xf32>
    %cst = arith.constant dense<0.000000e+00> : vector<56x128xf32>
    %2 = tpu.matmul %1, %0, %cst {dimension_numbers = #tpu.dot_dimension_numbers<[1], [0], [0], [1], [0, 0, 1, 1], [], []>} : vector<56x8xf32>, vector<8x128xf32>, vector<56x128xf32> -> vector<56x128xf32>
    %c0_3 = arith.constant 0 : index
    %c0_4 = arith.constant 0 : index
    %3 = vector.load %arg3[%c0_3, %c0_4] : memref<56x1xf32, #tpu.memory_space<vmem>>, vector<56x1xf32>
    %4 = vector.broadcast %3 : vector<56x1xf32> to vector<56x128xf32>
    %5 = arith.addf %2, %4 : vector<56x128xf32>
    %6 = arith.negf %5 : vector<56x128xf32>
    %7 = math.exp %6 : vector<56x128xf32>
    %cst_5 = arith.constant 1.000000e+00 : f32
    %8 = vector.broadcast %cst_5 : f32 to vector<56x128xf32>
    %9 = arith.addf %8, %7 : vector<56x128xf32>
    %10 = arith.divf %8, %9 : vector<56x128xf32>
    %c0_6 = arith.constant 0 : index
    %c0_7 = arith.constant 0 : index
    %11 = vector.load %arg4[%c0_6, %c0_7] : memref<56x56xf32, #tpu.memory_space<vmem>>, vector<56x56xf32>
    %cst_8 = arith.constant dense<0.000000e+00> : vector<56x128xf32>
    %12 = tpu.matmul %11, %10, %cst_8 {dimension_numbers = #tpu.dot_dimension_numbers<[1], [0], [0], [1], [0, 0, 1, 1], [], []>} : vector<56x56xf32>, vector<56x128xf32>, vector<56x128xf32> -> vector<56x128xf32>
    %c0_9 = arith.constant 0 : index
    %c0_10 = arith.constant 0 : index
    %13 = vector.load %arg5[%c0_9, %c0_10] : memref<56x1xf32, #tpu.memory_space<vmem>>, vector<56x1xf32>
    %14 = vector.broadcast %13 : vector<56x1xf32> to vector<56x128xf32>
    %15 = arith.addf %12, %14 : vector<56x128xf32>
    %16 = arith.negf %15 : vector<56x128xf32>
    %17 = math.exp %16 : vector<56x128xf32>
    %cst_11 = arith.constant 1.000000e+00 : f32
    %18 = vector.broadcast %cst_11 : f32 to vector<56x128xf32>
    %19 = arith.addf %18, %17 : vector<56x128xf32>
    %20 = arith.divf %18, %19 : vector<56x128xf32>
    %c0_12 = arith.constant 0 : index
    %c0_13 = arith.constant 0 : index
    %21 = vector.load %arg6[%c0_12, %c0_13] : memref<8x56xf32, #tpu.memory_space<vmem>>, vector<8x56xf32>
    %cst_14 = arith.constant dense<0.000000e+00> : vector<8x128xf32>
    %22 = tpu.matmul %21, %20, %cst_14 {dimension_numbers = #tpu.dot_dimension_numbers<[1], [0], [0], [1], [0, 0, 1, 1], [], []>} : vector<8x56xf32>, vector<56x128xf32>, vector<8x128xf32> -> vector<8x128xf32>
    %c0_15 = arith.constant 0 : index
    %c0_16 = arith.constant 0 : index
    %23 = vector.load %arg7[%c0_15, %c0_16] : memref<8x1xf32, #tpu.memory_space<vmem>>, vector<8x1xf32>
    %24 = vector.broadcast %23 : vector<8x1xf32> to vector<8x128xf32>
    %25 = arith.addf %22, %24 : vector<8x128xf32>
    %26 = vector.extract_strided_slice %25 {offsets = [0, 0], sizes = [1, 128], strides = [1, 1]} : vector<8x128xf32> to vector<1x128xf32>
    %27 = vector.extract_strided_slice %25 {offsets = [1, 0], sizes = [1, 128], strides = [1, 1]} : vector<8x128xf32> to vector<1x128xf32>
    %28 = arith.maximumf %26, %27 : vector<1x128xf32>
    %29 = arith.subf %26, %28 : vector<1x128xf32>
    %30 = math.exp %29 : vector<1x128xf32>
    %31 = arith.subf %27, %28 : vector<1x128xf32>
    %32 = math.exp %31 : vector<1x128xf32>
    %33 = arith.addf %30, %32 : vector<1x128xf32>
    %34 = math.log %33 : vector<1x128xf32>
    %35 = arith.addf %28, %34 : vector<1x128xf32>
    %36 = vector.broadcast %35 : vector<1x128xf32> to vector<8x128xf32>
    %37 = arith.subf %25, %36 : vector<8x128xf32>
    %c0_17 = arith.constant 0 : index
    %c0_18 = arith.constant 0 : index
    %38 = vector.load %arg8[%c0_17, %c0_18] : memref<8x128xf32, #tpu.memory_space<vmem>>, vector<8x128xf32>
    tpu.vector_store %arg8[%c0_17, %c0_18], %37 {strides = array<i32>} : memref<8x128xf32, #tpu.memory_space<vmem>>, vector<8x128xf32>,
    return
  }
  func.func @transform_0(%arg0: i32) -> (i32, i32) {
    %c0_i32 = arith.constant 0 : i32
    %c0_i32_0 = arith.constant 0 : i32
    return %c0_i32, %arg0 : i32, i32
  }
  func.func @transform_1(%arg0: i32) -> (i32, i32) {
    %c0_i32 = arith.constant 0 : i32
    %c0_i32_0 = arith.constant 0 : i32
    %c0_i32_1 = arith.constant 0 : i32
    return %c0_i32, %c0_i32_0 : i32, i32
  }
  func.func @transform_2(%arg0: i32) -> (i32, i32) {
    %c0_i32 = arith.constant 0 : i32
    %c0_i32_0 = arith.constant 0 : i32
    %c0_i32_1 = arith.constant 0 : i32
    return %c0_i32, %c0_i32_0 : i32, i32
  }
  func.func @transform_3(%arg0: i32) -> (i32, i32) {
    %c0_i32 = arith.constant 0 : i32
    %c0_i32_0 = arith.constant 0 : i32
    %c0_i32_1 = arith.constant 0 : i32
    return %c0_i32, %c0_i32_0 : i32, i32
  }
  func.func @transform_4(%arg0: i32) -> (i32, i32) {
    %c0_i32 = arith.constant 0 : i32
    %c0_i32_0 = arith.constant 0 : i32
    %c0_i32_1 = arith.constant 0 : i32
    return %c0_i32, %c0_i32_0 : i32, i32
  }
  func.func @transform_5(%arg0: i32) -> (i32, i32) {
    %c0_i32 = arith.constant 0 : i32
    %c0_i32_0 = arith.constant 0 : i32
    %c0_i32_1 = arith.constant 0 : i32
    return %c0_i32, %c0_i32_0 : i32, i32
  }
  func.func @transform_6(%arg0: i32) -> (i32, i32) {
    %c0_i32 = arith.constant 0 : i32
    %c0_i32_0 = arith.constant 0 : i32
    %c0_i32_1 = arith.constant 0 : i32
    return %c0_i32, %c0_i32_0 : i32, i32
  }
  func.func @transform_7(%arg0: i32) -> (i32, i32) {
    %c0_i32 = arith.constant 0 : i32
    %c0_i32_0 = arith.constant 0 : i32
    return %c0_i32, %arg0 : i32, i32
  }
}

</mosaic_0001>

<llo_original>
// kernel: tpu_custom_call.1
$region0: #{tpu_custom_call.1}
  #allocation0 [shape = 'u32[]', space=smem, size = 0x4, offset = 0x4, fixed_abs, tag = 'smem constant byte address 0x4 - core index']
  #allocation1 [shape = 'u32[72,128]{1,0:T(1,128)}', space=vmem, size = 0x9000, scoped, tag = 'internal scratch']
  %s0 = inlined_call_operand.vmem [shape: f32[8,128], index: 0, kind: input, shape index: {}]
  %s1 = inlined_call_operand.vmem [shape: f32[56,8], index: 1, kind: input, shape index: {}]
  %s2 = inlined_call_operand.vmem [shape: f32[56,1], index: 2, kind: input, shape index: {}]
  %s3 = inlined_call_operand.vmem [shape: f32[56,56], index: 3, kind: input, shape index: {}]
  %s4 = inlined_call_operand.vmem [shape: f32[56,1], index: 4, kind: input, shape index: {}]
  %s5 = inlined_call_operand.vmem [shape: f32[8,56], index: 5, kind: input, shape index: {}]
  %s6 = inlined_call_operand.vmem [shape: f32[8,1], index: 6, kind: input, shape index: {}]
  %s7 = inlined_call_operand.hbm [shape: f32[8,128], index: 7, kind: output, shape index: {}]
  %s8 = sld [smem:[#allocation0]]
  $region38: #{tpu_custom_call.1} parent=0
    _
  %s10 = ssub.s32 1, %s8
  %s11 = scalar_select 0, %s10, %s8
  $region1: #{tpu_custom_call.1} parent=0
    #allocation2 [shape = 'u8[4096]{0}', space=vmem, size = 0x1000, scoped, tag = 'output window, operand 0, single buffered']
    #allocation3 [shape = 's32[1]{0}', space=sflag, size = 0x4, scoped, tag = 'scoped memory for tpu_custom_call.1']
    %12 = vsyncpa [#allocation3], 0
    // Predicated region
    $region2: #{tpu_custom_call.1} parent=1 // pred_check
      _
    $region3: #{tpu_custom_call.1} parent=1 // pred_check_branch
      %14 = sbr.rel (0) target = $region5
    $region4: #{tpu_custom_call.1} parent=1 // pred_region
      _
    $region5: #{tpu_custom_call.1} parent=1 // pred_fallthru
      _
    // Predicated region
    $region6: #{tpu_custom_call.1} parent=1 // pred_check
      _
    $region7: #{tpu_custom_call.1} parent=1 // pred_check_branch
      %16 = sbr.rel (0) target = $region9
    $region8: #{tpu_custom_call.1} parent=1 // pred_region
      _
    $region9: #{tpu_custom_call.1} parent=1 // pred_fallthru
      _
    // Predicated region
    $region10: #{tpu_custom_call.1} parent=1 // pred_check
      _
    $region11: #{tpu_custom_call.1} parent=1 // pred_check_branch
      %18 = sbr.rel (0) target = $region13
    $region12: #{tpu_custom_call.1} parent=1 // pred_region
      _
    $region13: #{tpu_custom_call.1} parent=1 // pred_fallthru
      _
    // Predicated region
    $region14: #{tpu_custom_call.1} parent=1 // pred_check
      _
    $region15: #{tpu_custom_call.1} parent=1 // pred_check_branch
      %20 = sbr.rel (0) target = $region17
    $region16: #{tpu_custom_call.1} parent=1 // pred_region
      _
    $region17: #{tpu_custom_call.1} parent=1 // pred_fallthru
      _
    // Predicated region
    $region18: #{tpu_custom_call.1} parent=1 // pred_check
      _
    $region19: #{tpu_custom_call.1} parent=1 // pred_check_branch
      %22 = sbr.rel (0) target = $region21
    $region20: #{tpu_custom_call.1} parent=1 // pred_region
      _
    $region21: #{tpu_custom_call.1} parent=1 // pred_fallthru
      _
    // Predicated region
    $region22: #{tpu_custom_call.1} parent=1 // pred_check
      _
    $region23: #{tpu_custom_call.1} parent=1 // pred_check_branch
      %24 = sbr.rel (0) target = $region25
    $region24: #{tpu_custom_call.1} parent=1 // pred_region
      _
    $region25: #{tpu_custom_call.1} parent=1 // pred_fallthru
      _
    // Predicated region
    $region26: #{tpu_custom_call.1} parent=1 // pred_check
      _
    $region27: #{tpu_custom_call.1} parent=1 // pred_check_branch
      %26 = sbr.rel (0) target = $region29
    $region28: #{tpu_custom_call.1} parent=1 // pred_region
      _
    $region29: #{tpu_custom_call.1} parent=1 // pred_fallthru
      _
    %v27 = vld [vmem:[%s0] sm:$0xff]
    %v28 = vld [vmem:[%s1] sm:$0xff]
    %v29 = vld [vmem:[%s1 + $0x8] sm:$0xff]
    %v30 = vld [vmem:[%s1 + $0x10] sm:$0xff]
    %v31 = vld [vmem:[%s1 + $0x18] sm:$0xff]
    %v32 = vld [vmem:[%s1 + $0x20] sm:$0xff]
    %v33 = vld [vmem:[%s1 + $0x28] sm:$0xff]
    %v34 = vld [vmem:[%s1 + $0x30] sm:$0xff]
    %v35 = vld [vmem:[%s2] sm:$0xff]
    %v36 = vld [vmem:[%s2 + $0x8] sm:$0xff]
    %v37 = vld [vmem:[%s2 + $0x10] sm:$0xff]
    %v38 = vld [vmem:[%s2 + $0x18] sm:$0xff]
    %v39 = vld [vmem:[%s2 + $0x20] sm:$0xff]
    %v40 = vld [vmem:[%s2 + $0x28] sm:$0xff]
    %v41 = vld [vmem:[%s2 + $0x30] sm:$0xff]
    %43 = vset.pattern.permute.xlu0 0
    %44 = vperm.xlu0 %43, %v35
    %v45 = vpop.permute.xlu0 %44
    %48 = vset.pattern.permute.xlu0 0
    %49 = vperm.xlu0 %48, %v36
    %v50 = vpop.permute.xlu0 %49
    %53 = vset.pattern.permute.xlu0 0
    %54 = vperm.xlu0 %53, %v37
    %v55 = vpop.permute.xlu0 %54
    %58 = vset.pattern.permute.xlu0 0
    %59 = vperm.xlu0 %58, %v38
    %v60 = vpop.permute.xlu0 %59
    %63 = vset.pattern.permute.xlu0 0
    %64 = vperm.xlu0 %63, %v39
    %v65 = vpop.permute.xlu0 %64
    %68 = vset.pattern.permute.xlu0 0
    %69 = vperm.xlu0 %68, %v40
    %v70 = vpop.permute.xlu0 %69
    %73 = vset.pattern.permute.xlu0 0
    %74 = vperm.xlu0 %73, %v41
    %v75 = vpop.permute.xlu0 %74
    %vm77 = vcmask 64512
    %v79 = vsel %vm77, %v28, 0
    %v82 = vsel %vm77, %v29, 0
    %v85 = vsel %vm77, %v30, 0
    %v88 = vsel %vm77, %v31, 0
    %v91 = vsel %vm77, %v32, 0
    %v94 = vsel %vm77, %v33, 0
    %v97 = vsel %vm77, %v34, 0
    %99 = vmatpush.msra.mxu0 0.0
    %100 = vmatpush.msra.mxu0 0.0
    %101 = vmatpush.msra.mxu0 0.0
    %102 = vmatpush.msra.mxu0 0.0
    %103 = vmatpush.msra.mxu0 0.0
    %104 = vmatpush.msra.mxu0 0.0
    %105 = vmatpush.msra.mxu0 0.0
    %106 = vmatpush.msra.mxu0 0.0
    %107 = vmatpush.msra.mxu0 0.0
    %108 = vmatpush.msra.mxu0 0.0
    %109 = vmatpush.msra.mxu0 0.0
    %110 = vmatpush.msra.mxu0 0.0
    %111 = vmatpush.msra.mxu0 0.0
    %112 = vmatpush.msra.mxu0 0.0
    %113 = vmatpush.msra.mxu0 0.0
    %114 = vmatpush.msra.mxu0 %v27
    %115 = vmatmul.f32.gmra.mxu0 %v79
    %v116 = vpop.f32.mrf.mxu0
    %v117 = vadd.f32 %v45, %v116
    %118 = vmatmul.f32.gmra.mxu0 %v82
    %v119 = vpop.f32.mrf.mxu0
    %v120 = vadd.f32 %v50, %v119
    %121 = vmatmul.f32.gmra.mxu0 %v85
    %v122 = vpop.f32.mrf.mxu0
    %v123 = vadd.f32 %v55, %v122
    %124 = vmatmul.f32.gmra.mxu0 %v88
    %v125 = vpop.f32.mrf.mxu0
    %v126 = vadd.f32 %v60, %v125
    %127 = vmatmul.f32.gmra.mxu0 %v91
    %v128 = vpop.f32.mrf.mxu0
    %v129 = vadd.f32 %v65, %v128
    %130 = vmatmul.f32.gmra.mxu0 %v94
    %v131 = vpop.f32.mrf.mxu0
    %v132 = vadd.f32 %v70, %v131
    %133 = vmatmul.f32.gmra.mxu0 %v97
    %v134 = vpop.f32.mrf.mxu0
    %v135 = vadd.f32 %v75, %v134
    %136 = vdwg.mxu0
    %v137 = vxor.u32 %v117, 2147483648
    %v138 = vxor.u32 %v120, 2147483648
    %v139 = vxor.u32 %v123, 2147483648
    %v140 = vxor.u32 %v126, 2147483648
    %v141 = vxor.u32 %v129, 2147483648
    %v142 = vxor.u32 %v132, 2147483648
    %v143 = vxor.u32 %v135, 2147483648
    %v144 = vmul.f32 %v137, 1.442695
    %v145 = vpow.pop %v144
    %v146 = vmul.f32 %v138, 1.442695
    %v147 = vpow.pop %v146
    %v148 = vmul.f32 %v139, 1.442695
    %v149 = vpow.pop %v148
    %v150 = vmul.f32 %v140, 1.442695
    %v151 = vpow.pop %v150
    %v152 = vmul.f32 %v141, 1.442695
    %v153 = vpow.pop %v152
    %v154 = vmul.f32 %v142, 1.442695
    %v155 = vpow.pop %v154
    %v156 = vmul.f32 %v143, 1.442695
    %v157 = vpow.pop %v156
    %v158 = vadd.f32 %v145, 1.0
    %v159 = vadd.f32 %v147, 1.0
    %v160 = vadd.f32 %v149, 1.0
    %v161 = vadd.f32 %v151, 1.0
    %v162 = vadd.f32 %v153, 1.0
    %v163 = vadd.f32 %v155, 1.0
    %v164 = vadd.f32 %v157, 1.0
    %v165 = vrcp.pop %v158
    %v166 = vmul.f32 %v158, %v165
    %v167 = vsub.f32 1.0, %v166
    %v168 = vmul.f32 %v165, %v167
    %v169 = vadd.f32 %v165, %v168
    %vm170 = vweird.f32 %v158
    %vm171 = vweird.f32 %v165
    %vm172 = vmor %vm170, %vm171
    %v173 = vsel %vm172, %v165, %v169
    %v174 = vand.u32 2147483647, %v158
    %vm175 = vcmp.eq.f32.partialorder %v174, 8.507059e+37
    %v176 = vand.u32 %v158, 2147483648
    %v177 = vor.u32 1.1754944e-38, %v176
    %v178 = vsel %vm175, %v177, %v173
    %v179 = vmul.f32 1.0, %v178
    %v180 = vrcp.pop %v159
    %v181 = vmul.f32 %v159, %v180
    %v182 = vsub.f32 1.0, %v181
    %v183 = vmul.f32 %v180, %v182
    %v184 = vadd.f32 %v180, %v183
    %vm185 = vweird.f32 %v159
    %vm186 = vweird.f32 %v180
    %vm187 = vmor %vm185, %vm186
    %v188 = vsel %vm187, %v180, %v184
    %v189 = vand.u32 2147483647, %v159
    %vm190 = vcmp.eq.f32.partialorder %v189, 8.507059e+37
    %v191 = vand.u32 %v159, 2147483648
    %v192 = vor.u32 1.1754944e-38, %v191
    %v193 = vsel %vm190, %v192, %v188
    %v194 = vmul.f32 1.0, %v193
    %v195 = vrcp.pop %v160
    %v196 = vmul.f32 %v160, %v195
    %v197 = vsub.f32 1.0, %v196
    %v198 = vmul.f32 %v195, %v197
    %v199 = vadd.f32 %v195, %v198
    %vm200 = vweird.f32 %v160
    %vm201 = vweird.f32 %v195
    %vm202 = vmor %vm200, %vm201
    %v203 = vsel %vm202, %v195, %v199
    %v204 = vand.u32 2147483647, %v160
    %vm205 = vcmp.eq.f32.partialorder %v204, 8.507059e+37
    %v206 = vand.u32 %v160, 2147483648
    %v207 = vor.u32 1.1754944e-38, %v206
    %v208 = vsel %vm205, %v207, %v203
    %v209 = vmul.f32 1.0, %v208
    %v210 = vrcp.pop %v161
    %v211 = vmul.f32 %v161, %v210
    %v212 = vsub.f32 1.0, %v211
    %v213 = vmul.f32 %v210, %v212
    %v214 = vadd.f32 %v210, %v213
    %vm215 = vweird.f32 %v161
    %vm216 = vweird.f32 %v210
    %vm217 = vmor %vm215, %vm216
    %v218 = vsel %vm217, %v210, %v214
    %v219 = vand.u32 2147483647, %v161
    %vm220 = vcmp.eq.f32.partialorder %v219, 8.507059e+37
    %v221 = vand.u32 %v161, 2147483648
    %v222 = vor.u32 1.1754944e-38, %v221
    %v223 = vsel %vm220, %v222, %v218
    %v224 = vmul.f32 1.0, %v223
    %v225 = vrcp.pop %v162
    %v226 = vmul.f32 %v162, %v225
    %v227 = vsub.f32 1.0, %v226
    %v228 = vmul.f32 %v225, %v227
    %v229 = vadd.f32 %v225, %v228
    %vm230 = vweird.f32 %v162
    %vm231 = vweird.f32 %v225
    %vm232 = vmor %vm230, %vm231
    %v233 = vsel %vm232, %v225, %v229
    %v234 = vand.u32 2147483647, %v162
    %vm235 = vcmp.eq.f32.partialorder %v234, 8.507059e+37
    %v236 = vand.u32 %v162, 2147483648
    %v237 = vor.u32 1.1754944e-38, %v236
    %v238 = vsel %vm235, %v237, %v233
    %v239 = vmul.f32 1.0, %v238
    %v240 = vrcp.pop %v163
    %v241 = vmul.f32 %v163, %v240
    %v242 = vsub.f32 1.0, %v241
    %v243 = vmul.f32 %v240, %v242
    %v244 = vadd.f32 %v240, %v243
    %vm245 = vweird.f32 %v163
    %vm246 = vweird.f32 %v240
    %vm247 = vmor %vm245, %vm246
    %v248 = vsel %vm247, %v240, %v244
    %v249 = vand.u32 2147483647, %v163
    %vm250 = vcmp.eq.f32.partialorder %v249, 8.507059e+37
    %v251 = vand.u32 %v163, 2147483648
    %v252 = vor.u32 1.1754944e-38, %v251
    %v253 = vsel %vm250, %v252, %v248
    %v254 = vmul.f32 1.0, %v253
    %v255 = vrcp.pop %v164
    %v256 = vmul.f32 %v164, %v255
    %v257 = vsub.f32 1.0, %v256
    %v258 = vmul.f32 %v255, %v257
    %v259 = vadd.f32 %v255, %v258
    %vm260 = vweird.f32 %v164
    %vm261 = vweird.f32 %v255
    %vm262 = vmor %vm260, %vm261
    %v263 = vsel %vm262, %v255, %v259
    %v264 = vand.u32 2147483647, %v164
    %vm265 = vcmp.eq.f32.partialorder %v264, 8.507059e+37
    %v266 = vand.u32 %v164, 2147483648
    %v267 = vor.u32 1.1754944e-38, %v266
    %v268 = vsel %vm265, %v267, %v263
    %v269 = vmul.f32 1.0, %v268
    %v270 = vld [vmem:[%s3] sm:$0xff]
    %v271 = vld [vmem:[%s3 + $0x8] sm:$0xff]
    %v272 = vld [vmem:[%s3 + $0x10] sm:$0xff]
    %v273 = vld [vmem:[%s3 + $0x18] sm:$0xff]
    %v274 = vld [vmem:[%s3 + $0x20] sm:$0xff]
    %v275 = vld [vmem:[%s3 + $0x28] sm:$0xff]
    %v276 = vld [vmem:[%s3 + $0x30] sm:$0xff]
    %v277 = vld [vmem:[%s4] sm:$0xff]
    %v278 = vld [vmem:[%s4 + $0x8] sm:$0xff]
    %v279 = vld [vmem:[%s4 + $0x10] sm:$0xff]
    %v280 = vld [vmem:[%s4 + $0x18] sm:$0xff]
    %v281 = vld [vmem:[%s4 + $0x20] sm:$0xff]
    %v282 = vld [vmem:[%s4 + $0x28] sm:$0xff]
    %v283 = vld [vmem:[%s4 + $0x30] sm:$0xff]
    %285 = vset.pattern.permute.xlu0 0
    %286 = vperm.xlu0 %285, %v277
    %v287 = vpop.permute.xlu0 %286
    %290 = vset.pattern.permute.xlu0 0
    %291 = vperm.xlu0 %290, %v278
    %v292 = vpop.permute.xlu0 %291
    %295 = vset.pattern.permute.xlu0 0
    %296 = vperm.xlu0 %295, %v279
    %v297 = vpop.permute.xlu0 %296
    %300 = vset.pattern.permute.xlu0 0
    %301 = vperm.xlu0 %300, %v280
    %v302 = vpop.permute.xlu0 %301
    %305 = vset.pattern.permute.xlu0 0
    %306 = vperm.xlu0 %305, %v281
    %v307 = vpop.permute.xlu0 %306
    %310 = vset.pattern.permute.xlu0 0
    %311 = vperm.xlu0 %310, %v282
    %v312 = vpop.permute.xlu0 %311
    %315 = vset.pattern.permute.xlu0 0
    %316 = vperm.xlu0 %315, %v283
    %v317 = vpop.permute.xlu0 %316
    %vm319 = vcmask 457728
    %v321 = vsel %vm319, %v270, 0
    %v324 = vsel %vm319, %v271, 0
    %v327 = vsel %vm319, %v272, 0
    %v330 = vsel %vm319, %v273, 0
    %v333 = vsel %vm319, %v274, 0
    %v336 = vsel %vm319, %v275, 0
    %v339 = vsel %vm319, %v276, 0
    %341 = vmatpush.msra.mxu0 0.0
    %342 = vmatpush.msra.mxu0 0.0
    %343 = vmatpush.msra.mxu0 0.0
    %344 = vmatpush.msra.mxu0 0.0
    %345 = vmatpush.msra.mxu0 0.0
    %346 = vmatpush.msra.mxu0 0.0
    %347 = vmatpush.msra.mxu0 0.0
    %348 = vmatpush.msra.mxu0 0.0
    %349 = vmatpush.msra.mxu0 0.0
    %350 = vmatpush.msra.mxu0 %v269
    %351 = vmatpush.msra.mxu0 %v254
    %352 = vmatpush.msra.mxu0 %v239
    %353 = vmatpush.msra.mxu0 %v224
    %354 = vmatpush.msra.mxu0 %v209
    %355 = vmatpush.msra.mxu0 %v194
    %356 = vmatpush.msra.mxu0 %v179
    %357 = vmatmul.f32.gmra.mxu0 %v321
    %v358 = vpop.f32.mrf.mxu0
    %v359 = vadd.f32 %v287, %v358
    %360 = vmatmul.f32.gmra.mxu0 %v324
    %v361 = vpop.f32.mrf.mxu0
    %v362 = vadd.f32 %v292, %v361
    %363 = vmatmul.f32.gmra.mxu0 %v327
    %v364 = vpop.f32.mrf.mxu0
    %v365 = vadd.f32 %v297, %v364
    %366 = vmatmul.f32.gmra.mxu0 %v330
    %v367 = vpop.f32.mrf.mxu0
    %v368 = vadd.f32 %v302, %v367
    %369 = vmatmul.f32.gmra.mxu0 %v333
    %v370 = vpop.f32.mrf.mxu0
    %v371 = vadd.f32 %v307, %v370
    %372 = vmatmul.f32.gmra.mxu0 %v336
    %v373 = vpop.f32.mrf.mxu0
    %v374 = vadd.f32 %v312, %v373
    %375 = vmatmul.f32.gmra.mxu0 %v339
    %v376 = vpop.f32.mrf.mxu0
    %v377 = vadd.f32 %v317, %v376
    %378 = vdwg.mxu0
    %v379 = vxor.u32 %v359, 2147483648
    %v380 = vxor.u32 %v362, 2147483648
    %v381 = vxor.u32 %v365, 2147483648
    %v382 = vxor.u32 %v368, 2147483648
    %v383 = vxor.u32 %v371, 2147483648
    %v384 = vxor.u32 %v374, 2147483648
    %v385 = vxor.u32 %v377, 2147483648
    %v386 = vmul.f32 %v379, 1.442695
    %v387 = vpow.pop %v386
    %v388 = vmul.f32 %v380, 1.442695
    %v389 = vpow.pop %v388
    %v390 = vmul.f32 %v381, 1.442695
    %v391 = vpow.pop %v390
    %v392 = vmul.f32 %v382, 1.442695
    %v393 = vpow.pop %v392
    %v394 = vmul.f32 %v383, 1.442695
    %v395 = vpow.pop %v394
    %v396 = vmul.f32 %v384, 1.442695
    %v397 = vpow.pop %v396
    %v398 = vmul.f32 %v385, 1.442695
    %v399 = vpow.pop %v398
    %v400 = vadd.f32 %v387, 1.0
    %v401 = vadd.f32 %v389, 1.0
    %v402 = vadd.f32 %v391, 1.0
    %v403 = vadd.f32 %v393, 1.0
    %v404 = vadd.f32 %v395, 1.0
    %v405 = vadd.f32 %v397, 1.0
    %v406 = vadd.f32 %v399, 1.0
    %v407 = vrcp.pop %v400
    %v408 = vmul.f32 %v400, %v407
    %v409 = vsub.f32 1.0, %v408
    %v410 = vmul.f32 %v407, %v409
    %v411 = vadd.f32 %v407, %v410
    %vm412 = vweird.f32 %v400
    %vm413 = vweird.f32 %v407
    %vm414 = vmor %vm412, %vm413
    %v415 = vsel %vm414, %v407, %v411
    %v416 = vand.u32 2147483647, %v400
    %vm417 = vcmp.eq.f32.partialorder %v416, 8.507059e+37
    %v418 = vand.u32 %v400, 2147483648
    %v419 = vor.u32 1.1754944e-38, %v418
    %v420 = vsel %vm417, %v419, %v415
    %v421 = vmul.f32 1.0, %v420
    %v422 = vrcp.pop %v401
    %v423 = vmul.f32 %v401, %v422
    %v424 = vsub.f32 1.0, %v423
    %v425 = vmul.f32 %v422, %v424
    %v426 = vadd.f32 %v422, %v425
    %vm427 = vweird.f32 %v401
    %vm428 = vweird.f32 %v422
    %vm429 = vmor %vm427, %vm428
    %v430 = vsel %vm429, %v422, %v426
    %v431 = vand.u32 2147483647, %v401
    %vm432 = vcmp.eq.f32.partialorder %v431, 8.507059e+37
    %v433 = vand.u32 %v401, 2147483648
    %v434 = vor.u32 1.1754944e-38, %v433
    %v435 = vsel %vm432, %v434, %v430
    %v436 = vmul.f32 1.0, %v435
    %v437 = vrcp.pop %v402
    %v438 = vmul.f32 %v402, %v437
    %v439 = vsub.f32 1.0, %v438
    %v440 = vmul.f32 %v437, %v439
    %v441 = vadd.f32 %v437, %v440
    %vm442 = vweird.f32 %v402
    %vm443 = vweird.f32 %v437
    %vm444 = vmor %vm442, %vm443
    %v445 = vsel %vm444, %v437, %v441
    %v446 = vand.u32 2147483647, %v402
    %vm447 = vcmp.eq.f32.partialorder %v446, 8.507059e+37
    %v448 = vand.u32 %v402, 2147483648
    %v449 = vor.u32 1.1754944e-38, %v448
    %v450 = vsel %vm447, %v449, %v445
    %v451 = vmul.f32 1.0, %v450
    %v452 = vrcp.pop %v403
    %v453 = vmul.f32 %v403, %v452
    %v454 = vsub.f32 1.0, %v453
    %v455 = vmul.f32 %v452, %v454
    %v456 = vadd.f32 %v452, %v455
    %vm457 = vweird.f32 %v403
    %vm458 = vweird.f32 %v452
    %vm459 = vmor %vm457, %vm458
    %v460 = vsel %vm459, %v452, %v456
    %v461 = vand.u32 2147483647, %v403
    %vm462 = vcmp.eq.f32.partialorder %v461, 8.507059e+37
    %v463 = vand.u32 %v403, 2147483648
    %v464 = vor.u32 1.1754944e-38, %v463
    %v465 = vsel %vm462, %v464, %v460
    %v466 = vmul.f32 1.0, %v465
    %v467 = vrcp.pop %v404
    %v468 = vmul.f32 %v404, %v467
    %v469 = vsub.f32 1.0, %v468
    %v470 = vmul.f32 %v467, %v469
    %v471 = vadd.f32 %v467, %v470
    %vm472 = vweird.f32 %v404
    %vm473 = vweird.f32 %v467
    %vm474 = vmor %vm472, %vm473
    %v475 = vsel %vm474, %v467, %v471
    %v476 = vand.u32 2147483647, %v404
    %vm477 = vcmp.eq.f32.partialorder %v476, 8.507059e+37
    %v478 = vand.u32 %v404, 2147483648
    %v479 = vor.u32 1.1754944e-38, %v478
    %v480 = vsel %vm477, %v479, %v475
    %v481 = vmul.f32 1.0, %v480
    %v482 = vrcp.pop %v405
    %v483 = vmul.f32 %v405, %v482
    %v484 = vsub.f32 1.0, %v483
    %v485 = vmul.f32 %v482, %v484
    %v486 = vadd.f32 %v482, %v485
    %vm487 = vweird.f32 %v405
    %vm488 = vweird.f32 %v482
    %vm489 = vmor %vm487, %vm488
    %v490 = vsel %vm489, %v482, %v486
    %v491 = vand.u32 2147483647, %v405
    %vm492 = vcmp.eq.f32.partialorder %v491, 8.507059e+37
    %v493 = vand.u32 %v405, 2147483648
    %v494 = vor.u32 1.1754944e-38, %v493
    %v495 = vsel %vm492, %v494, %v490
    %v496 = vmul.f32 1.0, %v495
    %v497 = vrcp.pop %v406
    %v498 = vmul.f32 %v406, %v497
    %v499 = vsub.f32 1.0, %v498
    %v500 = vmul.f32 %v497, %v499
    %v501 = vadd.f32 %v497, %v500
    %vm502 = vweird.f32 %v406
    %vm503 = vweird.f32 %v497
    %vm504 = vmor %vm502, %vm503
    %v505 = vsel %vm504, %v497, %v501
    %v506 = vand.u32 2147483647, %v406
    %vm507 = vcmp.eq.f32.partialorder %v506, 8.507059e+37
    %v508 = vand.u32 %v406, 2147483648
    %v509 = vor.u32 1.1754944e-38, %v508
    %v510 = vsel %vm507, %v509, %v505
    %v511 = vmul.f32 1.0, %v510
    %v512 = vld [vmem:[%s5] sm:$0xff]
    %v513 = vld [vmem:[%s6] sm:$0xff]
    %515 = vset.pattern.permute.xlu0 0
    %516 = vperm.xlu0 %515, %v513
    %v517 = vpop.permute.xlu0 %516
    %v520 = vsel %vm319, %v512, 0
    %522 = vmatpush.msra.mxu0 0.0
    %523 = vmatpush.msra.mxu0 0.0
    %524 = vmatpush.msra.mxu0 0.0
    %525 = vmatpush.msra.mxu0 0.0
    %526 = vmatpush.msra.mxu0 0.0
    %527 = vmatpush.msra.mxu0 0.0
    %528 = vmatpush.msra.mxu0 0.0
    %529 = vmatpush.msra.mxu0 0.0
    %530 = vmatpush.msra.mxu0 0.0
    %531 = vmatpush.msra.mxu0 %v511
    %532 = vmatpush.msra.mxu0 %v496
    %533 = vmatpush.msra.mxu0 %v481
    %534 = vmatpush.msra.mxu0 %v466
    %535 = vmatpush.msra.mxu0 %v451
    %536 = vmatpush.msra.mxu0 %v436
    %537 = vmatpush.msra.mxu0 %v421
    %538 = vmatmul.f32.gmra.mxu0 %v520
    %v539 = vpop.f32.mrf.mxu0
    %v540 = vadd.f32 %v517, %v539
    %541 = vdwg.mxu0
    %v543 = vrot.slane %v540, 1
    %v545 = vmax.f32 %v540, %v543
    %v546 = vsub.f32 %v540, %v545
    %v547 = vmul.f32 %v546, 1.442695
    %v548 = vpow.pop %v547
    %v550 = vrot.slane %v545, 7
    %v552 = vsub.f32 %v540, %v550
    %v553 = vmul.f32 %v552, 1.442695
    %v554 = vpow.pop %v553
    %v556 = vrot.slane %v554, 1
    %v558 = vadd.f32 %v548, %v556
    %v559 = vlog2.pop %v558
    %v560 = vmul.f32 %v559, 0.6931472
    %v561 = vadd.f32 %v545, %v560
    %v562 = vperm.slane %v561, 0
    %v563 = vsub.f32 %v540, %v562
    %564 = vst [vmem:[#allocation2] sm:$0xff] %v563
    // Predicated region
    $region30: #{tpu_custom_call.1} parent=1 // pred_check
      _
    $region31: #{tpu_custom_call.1} parent=1 // pred_check_branch
      %566 = sbr.rel (0) target = $region33
    $region32: #{tpu_custom_call.1} parent=1 // pred_region
      %568 = vsyncadd [#allocation3], 0
      %s570 = sshll.u32 [#allocation2], 4
      %s571 = int_to_ptr.vmem [resolvable:$true] %s570
      %s572 = sshll.u32 %s7, 4
      %s573 = int_to_ptr.hbm [resolvable:$true] %s572
      %575 = dma.vmem_to_hbm [thread:$0]  %s571, 128, %s573, [#allocation3]
    $region33: #{tpu_custom_call.1} parent=1 // pred_fallthru
      _
    // Predicated region
    $region34: #{tpu_custom_call.1} parent=1 // pred_check
      _
    $region35: #{tpu_custom_call.1} parent=1 // pred_check_branch
      %577 = sbr.rel (0) target = $region37
    $region36: #{tpu_custom_call.1} parent=1 // pred_region
      %579 = dma.done [#allocation3], 128
    $region37: #{tpu_custom_call.1} parent=1 // pred_fallthru
      _
    %580 = vsyncpa [#allocation3], 1

</llo_original>
